<compile_context>
chip_gen: v7x
topology: tpu7x:2x2x1
jax: 0.10.0
libtpu: 0.0.40
codegen_flags: <defaults>
</compile_context>

<pallas_src>
import functools

import jax
import jax.numpy as jnp
import numpy as np
from jax import lax
from jax.experimental import pallas as pl
from jax.experimental.pallas import tpu as pltpu

EPS = 1e-5  # nn.LayerNorm default eps


# ----------------------------------------------------------------------------
# One-time probe: which rotate convention does pltpu.roll use on this jax
# version?  (True -> pltpu.roll(x, s) == jnp.roll(x, s): elements move toward
# higher indices for positive s.)  Makes the conv tap offsets version-robust.
# ----------------------------------------------------------------------------
@functools.lru_cache(maxsize=1)
def _roll_is_jnp_convention():
    def k(x_ref, o_ref):
        o_ref[...] = pltpu.roll(x_ref[...], 1, 1)

    x = lax.broadcasted_iota(jnp.int32, (8, 128), 1)
    out = pl.pallas_call(
        k, out_shape=jax.ShapeDtypeStruct((8, 128), jnp.int32))(x)
    return int(out[0, 1]) == 0


# ----------------------------------------------------------------------------
# Host-precomputed 0/1 masks: tap t = di*3+dj is valid where the 3x3 window
# (padding=1) stays inside the image.  Shape (9, 1, H*W).  Cached per (H, W).
# ----------------------------------------------------------------------------
def _make_tap_masks_np(H, W):
    idx = np.arange(H * W)
    hh, ww = idx // W, idx % W
    m = np.zeros((9, 1, H * W), np.float32)
    for di in range(3):
        for dj in range(3):
            ok = ((hh + di - 1 >= 0) & (hh + di - 1 < H)
                  & (ww + dj - 1 >= 0) & (ww + dj - 1 < W))
            m[di * 3 + dj, 0] = ok.astype(np.float32)
    return m


@functools.lru_cache(maxsize=16)
def _tap_masks_device(H, W):
    return jnp.asarray(_make_tap_masks_np(H, W))


# ----------------------------------------------------------------------------
# bt selection with honest VMEM accounting.
# Per grid step the footprint is roughly:
#     4 * bt * plane      double-buffered input + output (bt, C, HW) tiles
#     9 * plane           mask*weight VMEM scratch
#   ~ 7 * plane           live per-batch temporaries (xn, rolled tap, acc, ...)
#   + ~1 MiB              params, masks, slack
# where plane = C * HW * 4 bytes.
# ----------------------------------------------------------------------------
def _pick_block_batch(B, C, HW, *, target_x_bytes=4 << 20,
                      vmem_budget=40 << 20):
    plane = C * HW * 4
    fixed = (9 + 7) * plane + (1 << 20)

    bt = max(1, target_x_bytes // plane)                 # amortize step overhead
    bt_vmem = max(1, (vmem_budget - fixed) // (4 * plane))
    bt = min(bt, bt_vmem)
    if B >= 2:
        bt = min(bt, max(1, B // 2))                     # grid >= 2 (v7x megacore)
    bt = max(1, min(bt, B))
    footprint = 4 * bt * plane + fixed
    return int(bt), int(footprint)


# ----------------------------------------------------------------------------
# Kernel: one grid step processes a (bt, C, H*W) tile (bt batch elements).
# ----------------------------------------------------------------------------
def _msef_kernel(x_ref, gamma_ref, beta_ref, dww_ref, dwb_ref,
                 w1t_ref, b1_ref, w2_ref, b2_ref, mask_ref, o_ref,
                 mw_ref, *, shifts):
    bt = x_ref.shape[0]

    # Small parameters: loaded once per grid step.
    gamma = gamma_ref[...]           # (C, 1)
    beta = beta_ref[...]             # (C, 1)
    dwb = dwb_ref[...]               # (C, 1)
    w1t = w1t_ref[...]               # (C, Cr)   fc1 weight, transposed
    b1 = b1_ref[...]                 # (1, Cr)
    w2 = w2_ref[...]                 # (C, Cr)   fc2 weight
    b2 = b2_ref[...]                 # (C, 1)

    # Hoisted out of the batch loop: fused (mask * depthwise-weight) per tap,
    # materialized once per grid step into VMEM scratch.  (1,HW)*(C,1)->(C,HW)
    for t in range(9):
        mw_ref[t] = mask_ref[t] * dww_ref[t]

    @pl.loop(0, bt)
    def _(b):
        x = x_ref[b]                                         # (C, HW)

        # ---- LayerNorm over the channel (sublane) axis ----------------------
        mu = jnp.mean(x, axis=0, keepdims=True)              # (1, HW)
        var = jnp.mean((x - mu) ** 2, axis=0, keepdims=True)
        xn = (x - mu) * lax.rsqrt(var + EPS) * gamma + beta  # (C, HW)

        # ---- Depthwise 3x3 conv, padding=1 ----------------------------------
        # Each tap is a lane roll of the flattened H*W axis; out-of-image taps
        # are zeroed by the pre-multiplied mask*weight planes.
        acc = jnp.zeros_like(x)
        for t in range(9):
            tap = xn if shifts[t] == 0 else pltpu.roll(xn, shifts[t], 1)
            acc = acc + tap * mw_ref[t]
        x1 = acc + dwb

        # ---- SE attention on x_norm: entirely on VPU/XLU (no N=1 matmuls) ---
        pooled = jnp.mean(xn, axis=1, keepdims=True)         # (C, 1)
        y1 = jnp.maximum(                                    # (1, Cr)
            jnp.sum(w1t * pooled, axis=0, keepdims=True) + b1, 0.0)
        y2 = jnp.tanh(                                       # (C, 1)
            jnp.sum(w2 * y1, axis=1, keepdims=True) + b2)
        x2 = xn * y2                                         # (C, HW)

        # ---- Fuse + residual (lane-dense, unmasked store) -------------------
        o_ref[b] = x1 * x2 + x


# ----------------------------------------------------------------------------
# Wrapper: NCHW in / NCHW out (like the PyTorch module); only free reshapes.
# ----------------------------------------------------------------------------
def msef_block(x_nchw, params, *, block_batch=None):
    gamma, beta, dww, dwb, w1, b1, w2, b2 = params
    B, C, H, W = x_nchw.shape
    HW = H * W
    Cr = w1.shape[0]

    x = x_nchw.reshape(B, C, HW).astype(jnp.float32)         # no transpose

    if block_batch is not None:
        bt = int(block_batch)
        _, footprint = _pick_block_batch(B, C, HW)
        footprint = 4 * bt * C * HW * 4 + (9 + 7) * C * HW * 4 + (1 << 20)
    else:
        bt, footprint = _pick_block_batch(B, C, HW)

    # Non-divisor batch: pad with zeros (sliced off afterwards) instead of
    # silently dropping trailing batch elements.
    grid_b = pl.cdiv(B, bt)
    B_pad = grid_b * bt
    if B_pad != B:
        x = jnp.pad(x, ((0, B_pad - B), (0, 0), (0, 0)))

    # Flattened-lane offsets of the 9 conv taps -> roll amounts under the
    # probed rotate convention.
    offs = [(di - 1) * W + (dj - 1) for di in range(3) for dj in range(3)]
    sign = -1 if _roll_is_jnp_convention() else 1
    shifts = tuple((sign * o) % HW for o in offs)

    masks = _tap_masks_device(H, W)                          # (9, 1, HW) cached

    # SE params in a VPU-friendly layout (done once per call, tiny arrays).
    w1t = jnp.transpose(w1.astype(jnp.float32))              # (C, Cr)
    b1r = b1.astype(jnp.float32).reshape(1, Cr)              # (1, Cr)
    w2f = w2.astype(jnp.float32)                             # (C, Cr)
    b2c = b2.astype(jnp.float32).reshape(C, 1)               # (C, 1)

    kernel = functools.partial(_msef_kernel, shifts=shifts)

    # Explicit scoped-VMEM limit: honest footprint + headroom, kept safe for
    # v7x's 64 MiB physical VMEM while raising v5e's 16 MiB default.
    vmem_limit = int(min(max(footprint + (8 << 20), 32 << 20), 48 << 20))

    out = pl.pallas_call(
        kernel,
        out_shape=jax.ShapeDtypeStruct((B_pad, C, HW), jnp.float32),
        grid=(grid_b,),
        in_specs=[
            pl.BlockSpec((bt, C, HW), lambda i: (i, 0, 0)),     # x
            pl.BlockSpec((C, 1), lambda i: (0, 0)),             # gamma
            pl.BlockSpec((C, 1), lambda i: (0, 0)),             # beta
            pl.BlockSpec((9, C, 1), lambda i: (0, 0, 0)),       # dw weights
            pl.BlockSpec((C, 1), lambda i: (0, 0)),             # dw bias
            pl.BlockSpec((C, Cr), lambda i: (0, 0)),            # fc1 weight^T
            pl.BlockSpec((1, Cr), lambda i: (0, 0)),            # fc1 bias
            pl.BlockSpec((C, Cr), lambda i: (0, 0)),            # fc2 weight
            pl.BlockSpec((C, 1), lambda i: (0, 0)),             # fc2 bias
            pl.BlockSpec((9, 1, HW), lambda i: (0, 0, 0)),      # tap masks
        ],
        out_specs=pl.BlockSpec((bt, C, HW), lambda i: (i, 0, 0)),
        scratch_shapes=[pltpu.VMEM((9, C, HW), jnp.float32)],   # mask*weight
        compiler_params=pltpu.CompilerParams(
            dimension_semantics=("parallel",),    # megacore sharding on v7x
            vmem_limit_bytes=vmem_limit),
    )(x, gamma, beta, dww, dwb, w1t, b1r, w2f, b2c, masks)

    if B_pad != B:
        out = out[:B]
    return out.reshape(B, C, H, W)


# ----------------------------------------------------------------------------
# Deterministic parameter init (synthetic; mirrors the PyTorch init shapes)
# ----------------------------------------------------------------------------
def make_params(key, C, reduction_ratio=16):
    Cr = max(C // reduction_ratio, 1)
    k1, k2, k3 = jax.random.split(key, 3)

    def kaiming_uniform(k, shape, fan_in):
        bound = jnp.sqrt(3.0) * jnp.sqrt(2.0) / jnp.sqrt(float(fan_in))
        return jax.random.uniform(k, shape, jnp.float32, -bound, bound)

    gamma = jnp.ones((C, 1), jnp.float32)               # LayerNorm weight
    beta = jnp.zeros((C, 1), jnp.float32)               # LayerNorm bias

    dw = kaiming_uniform(k1, (C, 3, 3), 9)              # torch (C,1,3,3)
    dww = jnp.transpose(dw.reshape(C, 9), (1, 0)).reshape(9, C, 1)
    dwb = jnp.zeros((C, 1), jnp.float32)

    w1 = kaiming_uniform(k2, (Cr, C), C)                # torch fc1.weight
    b1 = jnp.zeros((Cr, 1), jnp.float32)
    w2 = kaiming_uniform(k3, (C, Cr), Cr)               # torch fc2.weight
    b2 = jnp.zeros((C, 1), jnp.float32)
    return (gamma, beta, dww, dwb, w1, b1, w2, b2)


# ----------------------------------------------------------------------------
# Pure-JAX reference (NCHW, exact f32 math)
# ----------------------------------------------------------------------------
def ref_forward(x_nchw, params):
    gamma, beta, dww, dwb, w1, b1, w2, b2 = params
    x = x_nchw.astype(jnp.float32)
    B, C, H, W = x.shape

    mu = x.mean(axis=1, keepdims=True)
    var = ((x - mu) ** 2).mean(axis=1, keepdims=True)
    xn = (x - mu) / jnp.sqrt(var + EPS) * gamma.reshape(1, C, 1, 1) \
        + beta.reshape(1, C, 1, 1)

    xp = jnp.pad(xn, ((0, 0), (0, 0), (1, 1), (1, 1)))
    acc = jnp.zeros_like(xn)
    for di in range(3):
        for dj in range(3):
            acc = acc + xp[:, :, di:di + H, dj:dj + W] \
                * dww[di * 3 + dj].reshape(1, C, 1, 1)
    x1 = acc + dwb.reshape(1, C, 1, 1)

    pooled = xn.mean(axis=(2, 3))                           # (B, C)
    y1 = jax.nn.relu(pooled @ w1.T + b1.reshape(1, -1))
    y2 = jnp.tanh(y1 @ w2.T + b2.reshape(1, -1))
    x2 = xn * y2[:, :, None, None]
    return x1 * x2 + x


if __name__ == "__main__":
    B, C, H, W = 2, 32, 16, 16       # filters=32 so the SE hidden dim C//16 = 2
    key = jax.random.PRNGKey(0)
    kx, kp = jax.random.split(key)
    x = jax.random.normal(kx, (B, C, H, W), jnp.float32)
    params = make_params(kp, C)

    out = jax.block_until_ready(msef_block(x, params))
    ref = jax.block_until_ready(ref_forward(x, params))

    assert out.shape == (B, C, H, W)
    err = float(jnp.max(jnp.abs(out - ref)))
    assert jnp.allclose(out, ref, atol=5e-4, rtol=5e-4), err

    # Also exercise the non-divisor / padded-batch path (B=3, forced bt=2).
    x3 = jax.random.normal(kx, (3, C, H, W), jnp.float32)
    out3 = jax.block_until_ready(msef_block(x3, params, block_batch=2))
    ref3 = jax.block_until_ready(ref_forward(x3, params))
    assert out3.shape == (3, C, H, W)
    assert jnp.allclose(out3, ref3, atol=5e-4, rtol=5e-4)

    print("KERNEL_OK")
</pallas_src>

<mosaic_0001>
module attributes {stable_mosaic.version = 11 : i64} {
  func.func @k(%arg0: memref<8x128xi32, #tpu.memory_space<vmem>>, %arg1: memref<8x128xi32, #tpu.memory_space<vmem>>) attributes {dimension_semantics = [], scalar_prefetch = 0 : i64, scratch_operands = 0 : i64, tpu.core_type = #tpu.core_type<tc>} {
    %c0 = arith.constant 0 : index
    %c0_0 = arith.constant 0 : index
    %0 = vector.load %arg0[%c0, %c0_0] : memref<8x128xi32, #tpu.memory_space<vmem>>, vector<8x128xi32>
    %c1_i32 = arith.constant 1 : i32
    %1 = tpu.dynamic_rotate %0 by %c1_i32 dim 1 : vector<8x128xi32>, i32 -> vector<8x128xi32>
    %c0_1 = arith.constant 0 : index
    %c0_2 = arith.constant 0 : index
    %2 = vector.load %arg1[%c0_1, %c0_2] : memref<8x128xi32, #tpu.memory_space<vmem>>, vector<8x128xi32>
    tpu.vector_store %arg1[%c0_1, %c0_2], %1 {strides = array<i32>} : memref<8x128xi32, #tpu.memory_space<vmem>>, vector<8x128xi32>,
    return
  }
}

</mosaic_0001>

<llo_original>
// kernel: tpu_custom_call.1
$region0: #{tpu_custom_call.1}
  #allocation0 [shape = 'u32[]', space=smem, size = 0x4, offset = 0x4, fixed_abs, tag = 'smem constant byte address 0x4 - core index']
  #allocation1 [shape = 'u32[144,128]{1,0:T(1,128)}', space=vmem, size = 0x12000, scoped, tag = 'internal scratch']
  %s0 = inlined_call_operand.hbm [shape: s32[8,128], index: 0, kind: input, shape index: {}]
  %s1 = inlined_call_operand.hbm [shape: s32[8,128], index: 1, kind: output, shape index: {}]
  %s2 = sld [smem:[#allocation0]]
  $region18: #{tpu_custom_call.1} parent=0
    _
  %s4 = ssub.s32 1, %s2
  %s5 = scalar_select 0, %s4, %s2
  $region1: #{tpu_custom_call.1} parent=0
    #allocation2 [shape = 'u8[4096]{0}', space=vmem, size = 0x1000, scoped, tag = 'input window, operand 0, single buffered']
    #allocation3 [shape = 's32[1]{0}', space=sflag, size = 0x4, scoped, tag = 'scoped memory for tpu_custom_call.1']
    #allocation4 [shape = 's32[1]{0}', space=sflag, size = 0x4, scoped, tag = 'scoped memory for tpu_custom_call.1']
    #allocation5 [shape = 'u8[4096]{0}', space=vmem, size = 0x1000, scoped, tag = 'output window, operand 0, single buffered']
    %6 = vsyncpa [#allocation3], 0
    %7 = vsyncpa [#allocation4], 0
    // Predicated region
    $region2: #{tpu_custom_call.1} parent=1 // pred_check
      _
    $region3: #{tpu_custom_call.1} parent=1 // pred_check_branch
      %9 = sbr.rel (0) target = $region5
    $region4: #{tpu_custom_call.1} parent=1 // pred_region
      %s11 = ssub.s32 128, 128
      %12 = vsyncadd [#allocation3], %s11
      %s14 = sshll.u32 [#allocation2], 4
      %s15 = int_to_ptr.vmem [resolvable:$true] %s14
      %17 = dma.hbm_to_vmem [thread:$0]  %s0, 128, %s15, [#allocation3]
    $region5: #{tpu_custom_call.1} parent=1 // pred_fallthru
      _
    // Predicated region
    $region6: #{tpu_custom_call.1} parent=1 // pred_check
      _
    $region7: #{tpu_custom_call.1} parent=1 // pred_check_branch
      %19 = sbr.rel (0) target = $region9
    $region8: #{tpu_custom_call.1} parent=1 // pred_region
      %20 = dma.done [#allocation3], 128
    $region9: #{tpu_custom_call.1} parent=1 // pred_fallthru
      _
    %v21 = vld [vmem:[#allocation2] sm:$0xff]
    %22 = vrot.lane.b32.xlu0 %v21, 1
    %v23 = vpop.permute.xlu0 %22
    %24 = vst [vmem:[#allocation5] sm:$0xff] %v23
    // Predicated region
    $region10: #{tpu_custom_call.1} parent=1 // pred_check
      _
    $region11: #{tpu_custom_call.1} parent=1 // pred_check_branch
      %26 = sbr.rel (0) target = $region13
    $region12: #{tpu_custom_call.1} parent=1 // pred_region
      %s28 = ssub.s32 128, 128
      %29 = vsyncadd [#allocation4], %s28
      %s31 = sshll.u32 [#allocation5], 4
      %s32 = int_to_ptr.vmem [resolvable:$true] %s31
      %34 = dma.vmem_to_hbm [thread:$0]  %s32, 128, %s1, [#allocation4]
    $region13: #{tpu_custom_call.1} parent=1 // pred_fallthru
      _
    // Predicated region
    $region14: #{tpu_custom_call.1} parent=1 // pred_check
      _
    $region15: #{tpu_custom_call.1} parent=1 // pred_check_branch
      %36 = sbr.rel (0) target = $region17
    $region16: #{tpu_custom_call.1} parent=1 // pred_region
      %37 = dma.done [#allocation4], 128
    $region17: #{tpu_custom_call.1} parent=1 // pred_fallthru
      _
    %38 = vsyncpa [#allocation3], 1
    %39 = vsyncpa [#allocation4], 1

</llo_original>
